<compile_context>
chip_gen: v7x
topology: tpu7x:2x2x1
jax: 0.10.0
libtpu: 0.0.40
codegen_flags: <defaults>
</compile_context>

<pallas_src>
import functools

import jax
import jax.numpy as jnp
from jax import lax
from jax.experimental import pallas as pl
from jax.experimental.pallas import tpu as pltpu

HIGH = jax.lax.Precision.HIGHEST  # reference-path only

# Raise v5e's 16 MiB default scoped VMEM limit while staying inside v7x's 64 MiB physical.
_VMEM_LIMIT = 48 * 1024 * 1024


def _cparams(sem):
    return pltpu.CompilerParams(dimension_semantics=sem, vmem_limit_bytes=_VMEM_LIMIT)


def _pick_tile(total, target, multiple=8):
    """Largest divisor of `total` that is <= target and a multiple of `multiple`.
    Falls back to the full extent, which is always a legal block shape."""
    if total <= target:
        return total
    for t in range(target, 0, -1):
        if total % t == 0 and t % multiple == 0:
            return t
    return total


# ----------------------------------------------------------------------------- linear
def _linear_kernel(x_ref, w_ref, b_ref, o_ref):
    x = x_ref[...].astype(jnp.bfloat16)
    y = jnp.dot(x, w_ref[...], preferred_element_type=jnp.float32) + b_ref[...]
    o_ref[...] = y.astype(o_ref.dtype)


def pallas_linear(x2d, w, b, out_dtype=None, block_m=512):
    """y = x @ w + b, tiled over rows.  `w` is expected pre-cast to bf16 on the host."""
    M, Cin = x2d.shape
    Cout = w.shape[1]
    out_dtype = x2d.dtype if out_dtype is None else out_dtype
    tm = _pick_tile(M, block_m)
    return pl.pallas_call(
        _linear_kernel,
        grid=(M // tm,),
        in_specs=[pl.BlockSpec((tm, Cin), lambda i: (i, 0)),
                  pl.BlockSpec((Cin, Cout), lambda i: (0, 0)),
                  pl.BlockSpec((1, Cout), lambda i: (0, 0))],
        out_specs=pl.BlockSpec((tm, Cout), lambda i: (i, 0)),
        out_shape=jax.ShapeDtypeStruct((M, Cout), out_dtype),
        compiler_params=_cparams(("parallel",)),
    )(x2d, w, b)


# ---------------------------------------------------------------- per-group fused linear
def _group_linear_kernel(x_ref, w_ref, b_ref, o_ref):
    x = x_ref[...].astype(jnp.bfloat16)
    y = jnp.dot(x, w_ref[0], preferred_element_type=jnp.float32) + b_ref[0]
    o_ref[0] = y.astype(o_ref.dtype)


def pallas_group_linear(x2d, w_g, b_g, block_m=512):
    """out[g] = x @ w_g[g] + b_g[g], written directly in the (G, M, Co) grouped layout
    (folds the old host-side offset/mask transpose).  With g as the inner (arbitrary)
    grid axis the x block is DMA'd only once per row tile."""
    M, Cin = x2d.shape
    G, _, Co = w_g.shape
    tm = _pick_tile(M, block_m)
    return pl.pallas_call(
        _group_linear_kernel,
        grid=(M // tm, G),
        in_specs=[pl.BlockSpec((tm, Cin), lambda i, g: (i, 0)),
                  pl.BlockSpec((1, Cin, Co), lambda i, g: (g, 0, 0)),
                  pl.BlockSpec((1, 1, Co), lambda i, g: (g, 0, 0))],
        out_specs=pl.BlockSpec((1, tm, Co), lambda i, g: (g, i, 0)),
        out_shape=jax.ShapeDtypeStruct((G, M, Co), jnp.float32),
        compiler_params=_cparams(("parallel", "arbitrary")),
    )(x2d, w_g, b_g)


# ---------------------------------------------------------- depthwise conv + LN + GELU
def _dwconv_ln_gelu_kernel(xp_ref, w_ref, b_ref, g_ref, bt_ref, o_ref, *, kd, rs, W):
    C = o_ref.shape[3]
    r0 = pl.multiple_of(pl.program_id(1) * rs, rs)
    # Halo'd row strip of the padded image, loaded once per grid step.
    xs = xp_ref[0, pl.ds(r0, rs + kd - 1), :, :]            # (rs+kd-1, Wpd, C)
    acc = jnp.zeros((rs, W, C), jnp.float32)
    for kh in range(kd):
        for kw in range(kd):
            wrow = w_ref[kh * kd + kw: kh * kd + kw + 1, :]  # (1, C)
            acc = acc + xs[kh:kh + rs, kw:kw + W, :] * wrow
    acc = acc + b_ref[...]
    mu = jnp.mean(acc, axis=-1, keepdims=True)
    var = jnp.mean((acc - mu) ** 2, axis=-1, keepdims=True)
    y = (acc - mu) * lax.rsqrt(var + 1e-6)                   # build_norm_layer eps=1e-6
    y = y * g_ref[...] + bt_ref[...]
    # TODO(synk): exact erf GELU replaced by tanh approximation (EUP-friendly).
    y = jax.nn.gelu(y, approximate=True)
    o_ref[0] = y.astype(o_ref.dtype)


def pallas_dwconv_ln_gelu(xpad, w_dw, b_dw, gamma, beta, H, W, kd, row_strip=32):
    N, Hpd, Wpd, C = xpad.shape
    # Keep the f32 accumulator strip <= ~512 KB to avoid spills, amortize step overhead.
    cap = max(8, (512 * 1024) // max(1, W * C * 4))
    rs = _pick_tile(H, min(row_strip, cap), multiple=1)
    kern = functools.partial(_dwconv_ln_gelu_kernel, kd=kd, rs=rs, W=W)
    # TODO(synk): out block last dim is C (<128 lanes for small C) -> masked stores;
    #             lane-dense packing only pays off once C >= 128.
    return pl.pallas_call(
        kern,
        grid=(N, H // rs),
        in_specs=[pl.BlockSpec((1, Hpd, Wpd, C), lambda n, s: (n, 0, 0, 0)),
                  pl.BlockSpec((kd * kd, C), lambda n, s: (0, 0)),
                  pl.BlockSpec((1, C), lambda n, s: (0, 0)),
                  pl.BlockSpec((1, C), lambda n, s: (0, 0)),
                  pl.BlockSpec((1, C), lambda n, s: (0, 0))],
        out_specs=pl.BlockSpec((1, rs, W, C), lambda n, s: (n, s, 0, 0)),
        out_shape=jax.ShapeDtypeStruct((N, H, W, C), xpad.dtype),
        compiler_params=_cparams(("parallel", "parallel")),
    )(xpad, w_dw, b_dw, gamma, beta)


# --------------------------------------------------------------------------- DCNv3 core
def _base_sampling_coords(H, W, Hin, Win, k, stride, dil, offset_scale):
    """Base (no learned offset) sampling pixel coords in the PADDED frame, grid_sample
    align_corners=False convention (pixel = loc_norm * size - 0.5).  Point order
    p = i_w * k + j_h, matching the official dcnv3_core_pytorch reference."""
    P = k * k
    ref_x = (((dil * (k - 1)) // 2) + 0.5 + stride * jnp.arange(W, dtype=jnp.float32)) / Win
    ref_y = (((dil * (k - 1)) // 2) + 0.5 + stride * jnp.arange(H, dtype=jnp.float32)) / Hin
    grid_x = (-((dil * (k - 1)) // 2) + dil * jnp.arange(k, dtype=jnp.float32)) / Win
    grid_y = (-((dil * (k - 1)) // 2) + dil * jnp.arange(k, dtype=jnp.float32)) / Hin
    gx = jnp.repeat(grid_x, k)   # x varies slowest
    gy = jnp.tile(grid_y, k)     # y varies fastest
    loc_x = ref_x[None, :, None] + gx[None, None, :] * offset_scale
    loc_y = ref_y[:, None, None] + gy[None, None, :] * offset_scale
    base_px = (jnp.broadcast_to(loc_x, (H, W, P)) * Win - 0.5).reshape(H * W, P)
    base_py = (jnp.broadcast_to(loc_y, (H, W, P)) * Hin - 0.5).reshape(H * W, P)
    return base_px, base_py


def _dcn_core_kernel(xg_ref, om_ref, bp_ref, sred_ref, wog_ref, bout_ref, o_ref, acc_ref,
                     *, H, W, gc, P, offset_scale):
    g = pl.program_id(2)
    last_g = pl.num_programs(2) - 1
    Wgc = W * gc
    TQ = bp_ref.shape[0]

    @pl.when(g == 0)
    def _():
        acc_ref[...] = jnp.zeros_like(acc_ref)

    om = om_ref[0, 0]                          # (TQ, 3P): [off_x | off_y | mask_logits]
    bp = bp_ref[...]                           # (TQ, 2P): [base_px | base_py] (unpadded frame)
    px = bp[:, 0:P] + om[:, 0:P] * offset_scale
    py = bp[:, P:2 * P] + om[:, P:2 * P] * offset_scale
    mlog = om[:, 2 * P:3 * P]

    # Softmax over sampling points (per group); reciprocal goes to the EUP slot.
    m = jnp.max(mlog, axis=-1, keepdims=True)
    e = jnp.exp(mlog - m)
    attn = e * pl.reciprocal(jnp.sum(e, axis=-1, keepdims=True), approx=True)  # (TQ, P)

    x0 = jnp.floor(px)
    y0 = jnp.floor(py)
    fx = px - x0
    fy = py - y0
    x0i = x0.astype(jnp.int32)
    y0i = y0.astype(jnp.int32)

    xg = xg_ref[g]                                              # (H, W*gc) bf16, VMEM-resident
    hh = lax.broadcasted_iota(jnp.int32, (TQ, H), 1)            # row index
    widx = lax.broadcasted_iota(jnp.int32, (TQ, Wgc), 1) // gc  # W index of each lane

    # Separable bilinear sampling: per point a tiny (TQ,H) row one-hot feeds the MXU
    # against the resident (H, W*gc) group map; column interpolation is one masked FMA
    # with attn pre-folded into the column weights.  Out-of-range corners match no
    # row/column => zeros padding without materializing a padded map.
    ctile = jnp.zeros((TQ, Wgc), jnp.float32)
    chunk = 3                                                   # batch row matmuls (MXU fill)
    p0 = 0
    while p0 < P:
        pts = list(range(p0, min(p0 + chunk, P)))
        wys = []
        for p in pts:
            y0p = y0i[:, p:p + 1]
            fyp = fy[:, p:p + 1]
            wys.append(jnp.where(hh == y0p, 1.0 - fyp, 0.0)
                       + jnp.where(hh == y0p + 1, fyp, 0.0))    # (TQ, H)
        wy = wys[0] if len(wys) == 1 else jnp.concatenate(wys, axis=0)
        a_all = jnp.dot(wy.astype(jnp.bfloat16), xg,
                        preferred_element_type=jnp.float32)     # (len(pts)*TQ, W*gc)
        for j, p in enumerate(pts):
            a = a_all[j * TQ:(j + 1) * TQ, :]
            w0 = attn[:, p:p + 1] * (1.0 - fx[:, p:p + 1])
            w1 = attn[:, p:p + 1] * fx[:, p:p + 1]
            x0p = x0i[:, p:p + 1]
            wx = jnp.where(widx == x0p, w0, 0.0) + jnp.where(widx == x0p + 1, w1, 0.0)
            ctile = ctile + wx * a
        p0 += chunk

    # Reduce over W with a tiny 0/1-selector matmul, then project this group's (TQ, gc)
    # sample with the plain (gc, C) slice of w_out, accumulating in f32 VMEM scratch.
    sampled = jnp.dot(ctile.astype(jnp.bfloat16), sred_ref[...],
                      preferred_element_type=jnp.float32)        # (TQ, gc)
    acc_ref[...] += jnp.dot(sampled.astype(jnp.bfloat16), wog_ref[0],
                            preferred_element_type=jnp.float32)  # (TQ, C)

    @pl.when(g == last_g)
    def _():
        o_ref[0] = (acc_ref[...] + bout_ref[...]).astype(o_ref.dtype)


def pallas_dcnv3_core(xg, om, w_out, b_out, cfg, H, W, out_dtype, tq_target=256):
    """xg: (N*G, H, W*gc) bf16 grouped input-projected features; om: (G, N, HW, 3P)
    fused per-group [off_x|off_y|mask] projection.  Returns output_proj(dcnv3_core(...))
    of shape (N, HW, C)."""
    k, stride, pad, dil = cfg["kernel_size"], cfg["stride"], cfg["pad"], cfg["dilation"]
    G, gc, offset_scale = cfg["group"], cfg["group_channels"], cfg["offset_scale"]
    P = k * k
    C = G * gc
    HW = H * W
    Wgc = W * gc
    N = xg.shape[0] // G
    Hin, Win = H + 2 * pad, W + 2 * pad
    Hout = (Hin - (dil * (k - 1) + 1)) // stride + 1
    Wout = (Win - (dil * (k - 1) + 1)) // stride + 1
    assert Hout == H and Wout == W, "offset/mask grid must match output grid"

    # Base sampling coordinates, shifted into the unpadded pixel frame.
    bpx, bpy = _base_sampling_coords(H, W, Hin, Win, k, stride, dil, offset_scale)
    bp = jnp.concatenate([bpx - pad, bpy - pad], axis=-1)            # (HW, 2P)

    # Per-group (gc, C) slices of the output-projection weight (bf16 MXU operand).
    wog = w_out.reshape(G, gc, C).astype(jnp.bfloat16)
    # 0/1 selector summing the (W, gc) sampling lanes down to gc channels.
    sred = (jnp.arange(Wgc, dtype=jnp.int32)[:, None] % gc
            == jnp.arange(gc, dtype=jnp.int32)[None, :]).astype(jnp.bfloat16)

    TQ = _pick_tile(HW, tq_target)

    kern = functools.partial(_dcn_core_kernel, H=H, W=W, gc=gc, P=P,
                             offset_scale=float(offset_scale))
    return pl.pallas_call(
        kern,
        grid=(N, HW // TQ, G),
        in_specs=[pl.BlockSpec((G, H, Wgc), lambda n, q, g: (n, 0, 0)),
                  pl.BlockSpec((1, 1, TQ, 3 * P), lambda n, q, g: (g, n, q, 0)),
                  pl.BlockSpec((TQ, 2 * P), lambda n, q, g: (q, 0)),
                  pl.BlockSpec((Wgc, gc), lambda n, q, g: (0, 0)),
                  pl.BlockSpec((1, gc, C), lambda n, q, g: (g, 0, 0)),
                  pl.BlockSpec((1, C), lambda n, q, g: (0, 0))],
        out_specs=pl.BlockSpec((1, TQ, C), lambda n, q, g: (n, q, 0)),
        out_shape=jax.ShapeDtypeStruct((N, HW, C), out_dtype),
        scratch_shapes=[pltpu.VMEM((TQ, C), jnp.float32)],
        compiler_params=_cparams(("parallel", "parallel", "arbitrary")),
    )(xg, om, bp, sred, wog, b_out)


# ------------------------------------------------------------------- full forward pass
def dcnv3_forward(x, params, cfg):
    N, H, W, C = x.shape
    M = N * H * W
    HW = H * W
    kd = cfg["dw_kernel_size"]
    G = cfg["group"]
    gc = cfg["group_channels"]
    P = cfg["kernel_size"] ** 2

    # x = input_proj(input), emitted in bf16 (the core's MXU operand dtype), then laid
    # out per group as (N*G, H, W*gc) so the core keeps it VMEM-resident per image.
    xproj = pallas_linear(x.reshape(M, C), params["w_in"].astype(jnp.bfloat16),
                          params["b_in"], out_dtype=jnp.bfloat16)
    # TODO(synk): this grouped re-layout could be folded into the input_proj out_spec.
    xg = (xproj.reshape(N, H, W, G, gc).transpose(0, 3, 1, 2, 4)
          .reshape(N * G, H, W * gc))

    # x1 = GELU(LN(depthwise_conv(input)))
    pdw = (kd - 1) // 2
    xpd = jnp.pad(x, ((0, 0), (pdw, pdw), (pdw, pdw), (0, 0)))
    x1 = pallas_dwconv_ln_gelu(xpd, params["w_dw"], params["b_dw"],
                               params["gamma"], params["beta"], H, W, kd)

    # Fused offset|mask projection written straight into the per-group (G, M, 3P)
    # layout; per-group column order is [off_x(P) | off_y(P) | mask(P)].
    w_off_r = params["w_off"].reshape(C, G, P, 2)
    w_msk_r = params["w_msk"].reshape(C, G, P)
    w_om = jnp.transpose(jnp.concatenate([w_off_r[..., 0], w_off_r[..., 1], w_msk_r],
                                         axis=-1), (1, 0, 2))                 # (G, C, 3P)
    b_off_r = params["b_off"].reshape(G, P, 2)
    b_om = jnp.concatenate([b_off_r[..., 0], b_off_r[..., 1],
                            params["b_msk"].reshape(G, P)], axis=-1)[:, None, :]  # (G,1,3P)
    om = pallas_group_linear(x1.reshape(M, C), w_om.astype(jnp.bfloat16), b_om)
    om = om.reshape(G, N, HW, 3 * P)

    # DCNv3 core sampling with the output projection fused (grid reduction over groups).
    out = pallas_dcnv3_core(xg, om, params["w_out"], params["b_out"], cfg, H, W,
                            out_dtype=x.dtype)
    return out.reshape(N, H, W, C)


# ------------------------------------------------------------- pure-JAX reference check
def _dcnv3_core_ref(x, offset, mask_logits, cfg):
    N, H, W, C = x.shape
    k, stride, pad, dil = cfg["kernel_size"], cfg["stride"], cfg["pad"], cfg["dilation"]
    G, gc, offset_scale = cfg["group"], cfg["group_channels"], cfg["offset_scale"]
    P = k * k
    xpad = jnp.pad(x, ((0, 0), (pad, pad), (pad, pad), (0, 0)))
    Hin, Win = H + 2 * pad, W + 2 * pad
    HW = H * W
    base_px, base_py = _base_sampling_coords(H, W, Hin, Win, k, stride, dil, offset_scale)
    off = offset.reshape(N, HW, G, P, 2)
    attn = jax.nn.softmax(mask_logits.reshape(N, HW, G, P), axis=-1)
    px = base_px[None, :, None, :] + off[..., 0] * offset_scale
    py = base_py[None, :, None, :] + off[..., 1] * offset_scale
    x0f = jnp.floor(px); y0f = jnp.floor(py)
    fx = px - x0f; fy = py - y0f
    x0 = x0f.astype(jnp.int32); y0 = y0f.astype(jnp.int32)
    xg = xpad.reshape(N, Hin * Win, G, gc).transpose(0, 2, 1, 3)
    acc = jnp.zeros((N, G, HW, P, gc), jnp.float32)
    for dy in (0, 1):
        for dx in (0, 1):
            xi = x0 + dx; yi = y0 + dy
            wgt = (fx if dx else 1.0 - fx) * (fy if dy else 1.0 - fy)
            valid = (xi >= 0) & (xi < Win) & (yi >= 0) & (yi < Hin)
            wgt = jnp.where(valid, wgt, 0.0)
            idx = jnp.clip(yi, 0, Hin - 1) * Win + jnp.clip(xi, 0, Win - 1)
            idx_t = idx.transpose(0, 2, 1, 3).reshape(N, G, HW * P)
            gvals = jnp.take_along_axis(xg, idx_t[..., None], axis=2).reshape(N, G, HW, P, gc)
            acc = acc + gvals * wgt.transpose(0, 2, 1, 3)[..., None]
    out = jnp.sum(acc * attn.transpose(0, 2, 1, 3)[..., None], axis=3)
    return out.transpose(0, 2, 1, 3).reshape(N, H, W, C)


def dcnv3_forward_ref(x, params, cfg):
    N, H, W, C = x.shape
    kd = cfg["dw_kernel_size"]

    def lin(v, w, b):
        return jnp.dot(v.reshape(-1, v.shape[-1]), w, precision=HIGH).reshape(
            v.shape[:-1] + (w.shape[1],)) + b

    xproj = lin(x, params["w_in"], params["b_in"])
    pdw = (kd - 1) // 2
    xpd = jnp.pad(x, ((0, 0), (pdw, pdw), (pdw, pdw), (0, 0)))
    acc = jnp.zeros((N, H, W, C), jnp.float32)
    for kh in range(kd):
        for kw in range(kd):
            acc = acc + xpd[:, kh:kh + H, kw:kw + W, :] * params["w_dw"][kh * kd + kw]
    acc = acc + params["b_dw"]
    mu = acc.mean(-1, keepdims=True)
    var = ((acc - mu) ** 2).mean(-1, keepdims=True)
    x1 = (acc - mu) * jax.lax.rsqrt(var + 1e-6) * params["gamma"] + params["beta"]
    x1 = jax.nn.gelu(x1, approximate=False)          # exact erf GELU (module semantics)
    offset = lin(x1, params["w_off"], params["b_off"])
    mlog = lin(x1, params["w_msk"], params["b_msk"])
    core = _dcnv3_core_ref(xproj, offset, mlog, cfg)
    return lin(core, params["w_out"], params["b_out"])


# --------------------------------------------------------------------------------- main
if __name__ == "__main__":
    cfg = dict(channels=32, kernel_size=3, dw_kernel_size=3, stride=1, pad=1,
               dilation=1, group=4, offset_scale=1.0)
    cfg["group_channels"] = cfg["channels"] // cfg["group"]

    N, H, W, C = 2, 16, 16, cfg["channels"]
    G, P, kd = cfg["group"], cfg["kernel_size"] ** 2, cfg["dw_kernel_size"]

    key = jax.random.PRNGKey(0)
    ks = jax.random.split(key, 10)

    def xavier(k_, fan_in, fan_out):
        a = (6.0 / (fan_in + fan_out)) ** 0.5
        return jax.random.uniform(k_, (fan_in, fan_out), jnp.float32, -a, a)

    # NOTE: the PyTorch module initializes offset/mask weights to zero; here they get
    # small deterministic random values so the deformable-sampling path is exercised.
    params = dict(
        w_in=xavier(ks[0], C, C), b_in=jnp.zeros((1, C), jnp.float32),
        w_out=xavier(ks[1], C, C), b_out=jnp.zeros((1, C), jnp.float32),
        w_dw=0.1 * jax.random.normal(ks[2], (kd * kd, C), jnp.float32),
        b_dw=0.1 * jax.random.normal(ks[3], (1, C), jnp.float32),
        gamma=jnp.ones((1, C), jnp.float32), beta=jnp.zeros((1, C), jnp.float32),
        w_off=0.05 * jax.random.normal(ks[4], (C, G * P * 2), jnp.float32),
        b_off=0.05 * jax.random.normal(ks[5], (1, G * P * 2), jnp.float32),
        w_msk=0.05 * jax.random.normal(ks[6], (C, G * P), jnp.float32),
        b_msk=0.05 * jax.random.normal(ks[7], (1, G * P), jnp.float32),
    )

    x = jax.random.normal(ks[8], (N, H, W, C), jnp.float32)

    out = jax.block_until_ready(dcnv3_forward(x, params, cfg))
    ref = jax.block_until_ready(dcnv3_forward_ref(x, params, cfg))

    assert out.shape == (N, H, W, C)
    assert bool(jnp.all(jnp.isfinite(out)))

    diff = jnp.abs(out - ref)
    max_err = float(jnp.max(diff))
    mean_err = float(jnp.mean(diff))
    scale = float(jnp.max(jnp.abs(ref))) + 1e-6
    # bf16 MXU math + tanh-GELU in the kernels vs the exact-f32/erf reference.
    assert max_err < 0.05 * scale + 5e-3, f"max|diff|={max_err} (scale={scale})"
    assert mean_err < 2e-2, f"mean|diff|={mean_err}"
    print("KERNEL_OK")
</pallas_src>

<mosaic_0001>
module attributes {stable_mosaic.version = 11 : i64} {
  func.func @_linear_kernel(%arg0: i32, %arg1: memref<512x32xf32, #tpu.memory_space<vmem>>, %arg2: memref<32x32xbf16, #tpu.memory_space<vmem>>, %arg3: memref<1x32xf32, #tpu.memory_space<vmem>>, %arg4: memref<512x32xbf16, #tpu.memory_space<vmem>>) attributes {dimension_semantics = [#tpu.dimension_semantics<parallel>], iteration_bounds = array<i64: 1>, scalar_prefetch = 0 : i64, scratch_operands = 0 : i64, tpu.core_type = #tpu.core_type<tc>, window_params = [{transform_indices = @transform_0, window_bounds = array<i64: 512, 32>}, {pipeline_mode = #tpu.pipeline_mode<synchronous>, transform_indices = @transform_1, window_bounds = array<i64: 32, 32>}, {pipeline_mode = #tpu.pipeline_mode<synchronous>, transform_indices = @transform_2, window_bounds = array<i64: 1, 32>}, {transform_indices = @transform_3, window_bounds = array<i64: 512, 32>}]} {
    %c0 = arith.constant 0 : index
    %c0_0 = arith.constant 0 : index
    %0 = vector.load %arg1[%c0, %c0_0] : memref<512x32xf32, #tpu.memory_space<vmem>>, vector<512x32xf32>
    %1 = arith.truncf %0 : vector<512x32xf32> to vector<512x32xbf16>
    %c0_1 = arith.constant 0 : index
    %c0_2 = arith.constant 0 : index
    %2 = vector.load %arg2[%c0_1, %c0_2] : memref<32x32xbf16, #tpu.memory_space<vmem>>, vector<32x32xbf16>
    %cst = arith.constant dense<0.000000e+00> : vector<512x32xf32>
    %3 = tpu.matmul %1, %2, %cst {dimension_numbers = #tpu.dot_dimension_numbers<[1], [0], [0], [1], [0, 0, 1, 1], [], []>} : vector<512x32xbf16>, vector<32x32xbf16>, vector<512x32xf32> -> vector<512x32xf32>
    %c0_3 = arith.constant 0 : index
    %c0_4 = arith.constant 0 : index
    %4 = vector.load %arg3[%c0_3, %c0_4] : memref<1x32xf32, #tpu.memory_space<vmem>>, vector<1x32xf32>
    %5 = vector.broadcast %4 : vector<1x32xf32> to vector<512x32xf32>
    %6 = arith.addf %3, %5 : vector<512x32xf32>
    %7 = arith.truncf %6 : vector<512x32xf32> to vector<512x32xbf16>
    %c0_5 = arith.constant 0 : index
    %c0_6 = arith.constant 0 : index
    %8 = vector.load %arg4[%c0_5, %c0_6] : memref<512x32xbf16, #tpu.memory_space<vmem>>, vector<512x32xbf16>
    tpu.vector_store %arg4[%c0_5, %c0_6], %7 {strides = array<i32>} : memref<512x32xbf16, #tpu.memory_space<vmem>>, vector<512x32xbf16>,
    return
  }
  func.func @transform_0(%arg0: i32) -> (i32, i32) {
    %c0_i32 = arith.constant 0 : i32
    %c0_i32_0 = arith.constant 0 : i32
    return %arg0, %c0_i32 : i32, i32
  }
  func.func @transform_1(%arg0: i32) -> (i32, i32) {
    %c0_i32 = arith.constant 0 : i32
    %c0_i32_0 = arith.constant 0 : i32
    %c0_i32_1 = arith.constant 0 : i32
    return %c0_i32, %c0_i32_0 : i32, i32
  }
  func.func @transform_2(%arg0: i32) -> (i32, i32) {
    %c0_i32 = arith.constant 0 : i32
    %c0_i32_0 = arith.constant 0 : i32
    %c0_i32_1 = arith.constant 0 : i32
    return %c0_i32, %c0_i32_0 : i32, i32
  }
  func.func @transform_3(%arg0: i32) -> (i32, i32) {
    %c0_i32 = arith.constant 0 : i32
    %c0_i32_0 = arith.constant 0 : i32
    return %arg0, %c0_i32 : i32, i32
  }
}

</mosaic_0001>

<llo_original>
// kernel: tpu_custom_call.1
$region0: #{tpu_custom_call.1}
  #allocation0 [shape = 'u32[]', space=smem, size = 0x4, offset = 0x4, fixed_abs, tag = 'smem constant byte address 0x4 - core index']
  #allocation1 [shape = 'u32[144,128]{1,0:T(1,128)}', space=vmem, size = 0x12000, scoped, tag = 'internal scratch']
  %s0 = inlined_call_operand.vmem [shape: f32[512,32], index: 0, kind: input, shape index: {}]
  %s1 = inlined_call_operand.vmem [shape: bf16[32,32], index: 1, kind: input, shape index: {}]
  %s2 = inlined_call_operand.vmem [shape: f32[1,32], index: 2, kind: input, shape index: {}]
  %s3 = inlined_call_operand.vmem [shape: bf16[512,32], index: 3, kind: output, shape index: {}]
  %s4 = sld [smem:[#allocation0]]
  $region22: #{tpu_custom_call.1} parent=0
    _
  %s6 = ssub.s32 1, %s4
  %s7 = scalar_select 0, %s6, %s4
  // Predicated region
  $region2: #{tpu_custom_call.1} parent=0 // pred_check
    _
  $region3: #{tpu_custom_call.1} parent=0 // pred_check_branch
    %9 = sbr.rel (0) target = $region5
  $region4: #{tpu_custom_call.1} parent=0 // pred_region
    _
  $region5: #{tpu_custom_call.1} parent=0 // pred_fallthru
    _
  // Predicated region
  $region6: #{tpu_custom_call.1} parent=0 // pred_check
    _
  $region7: #{tpu_custom_call.1} parent=0 // pred_check_branch
    %11 = sbr.rel (0) target = $region9
  $region8: #{tpu_custom_call.1} parent=0 // pred_region
    _
  $region9: #{tpu_custom_call.1} parent=0 // pred_fallthru
    _
  // Predicated region
  $region10: #{tpu_custom_call.1} parent=0 // pred_check
    _
  $region11: #{tpu_custom_call.1} parent=0 // pred_check_branch
    %13 = sbr.rel (0) target = $region13
  $region12: #{tpu_custom_call.1} parent=0 // pred_region
    _
  $region13: #{tpu_custom_call.1} parent=0 // pred_fallthru
    _
  %v15 = vld [vmem:[%s0] sm:$0xff]
  %v16 = vld [vmem:[%s0 + $0x8] sm:$0xff]
  %v17 = vld [vmem:[%s0 + $0x10] sm:$0xff]
  %v18 = vld [vmem:[%s0 + $0x18] sm:$0xff]
  %v19 = vld [vmem:[%s0 + $0x20] sm:$0xff]
  %v20 = vld [vmem:[%s0 + $0x28] sm:$0xff]
  %v21 = vld [vmem:[%s0 + $0x30] sm:$0xff]
  %v22 = vld [vmem:[%s0 + $0x38] sm:$0xff]
  %v23 = vld [vmem:[%s0 + $0x40] sm:$0xff]
  %v24 = vld [vmem:[%s0 + $0x48] sm:$0xff]
  %v25 = vld [vmem:[%s0 + $0x50] sm:$0xff]
  %v26 = vld [vmem:[%s0 + $0x58] sm:$0xff]
  %v27 = vld [vmem:[%s0 + $0x60] sm:$0xff]
  %v28 = vld [vmem:[%s0 + $0x68] sm:$0xff]
  %v29 = vld [vmem:[%s0 + $0x70] sm:$0xff]
  %v30 = vld [vmem:[%s0 + $0x78] sm:$0xff]
  %v31 = vld [vmem:[%s0 + $0x80] sm:$0xff]
  %v32 = vld [vmem:[%s0 + $0x88] sm:$0xff]
  %v33 = vld [vmem:[%s0 + $0x90] sm:$0xff]
  %v34 = vld [vmem:[%s0 + $0x98] sm:$0xff]
  %v35 = vld [vmem:[%s0 + $0xa0] sm:$0xff]
  %v36 = vld [vmem:[%s0 + $0xa8] sm:$0xff]
  %v37 = vld [vmem:[%s0 + $0xb0] sm:$0xff]
  %v38 = vld [vmem:[%s0 + $0xb8] sm:$0xff]
  %v39 = vld [vmem:[%s0 + $0xc0] sm:$0xff]
  %v40 = vld [vmem:[%s0 + $0xc8] sm:$0xff]
  %v41 = vld [vmem:[%s0 + $0xd0] sm:$0xff]
  %v42 = vld [vmem:[%s0 + $0xd8] sm:$0xff]
  %v43 = vld [vmem:[%s0 + $0xe0] sm:$0xff]
  %v44 = vld [vmem:[%s0 + $0xe8] sm:$0xff]
  %v45 = vld [vmem:[%s0 + $0xf0] sm:$0xff]
  %v46 = vld [vmem:[%s0 + $0xf8] sm:$0xff]
  %v47 = vld [vmem:[%s0 + $0x100] sm:$0xff]
  %v48 = vld [vmem:[%s0 + $0x108] sm:$0xff]
  %v49 = vld [vmem:[%s0 + $0x110] sm:$0xff]
  %v50 = vld [vmem:[%s0 + $0x118] sm:$0xff]
  %v51 = vld [vmem:[%s0 + $0x120] sm:$0xff]
  %v52 = vld [vmem:[%s0 + $0x128] sm:$0xff]
  %v53 = vld [vmem:[%s0 + $0x130] sm:$0xff]
  %v54 = vld [vmem:[%s0 + $0x138] sm:$0xff]
  %v55 = vld [vmem:[%s0 + $0x140] sm:$0xff]
  %v56 = vld [vmem:[%s0 + $0x148] sm:$0xff]
  %v57 = vld [vmem:[%s0 + $0x150] sm:$0xff]
  %v58 = vld [vmem:[%s0 + $0x158] sm:$0xff]
  %v59 = vld [vmem:[%s0 + $0x160] sm:$0xff]
  %v60 = vld [vmem:[%s0 + $0x168] sm:$0xff]
  %v61 = vld [vmem:[%s0 + $0x170] sm:$0xff]
  %v62 = vld [vmem:[%s0 + $0x178] sm:$0xff]
  %v63 = vld [vmem:[%s0 + $0x180] sm:$0xff]
  %v64 = vld [vmem:[%s0 + $0x188] sm:$0xff]
  %v65 = vld [vmem:[%s0 + $0x190] sm:$0xff]
  %v66 = vld [vmem:[%s0 + $0x198] sm:$0xff]
  %v67 = vld [vmem:[%s0 + $0x1a0] sm:$0xff]
  %v68 = vld [vmem:[%s0 + $0x1a8] sm:$0xff]
  %v69 = vld [vmem:[%s0 + $0x1b0] sm:$0xff]
  %v70 = vld [vmem:[%s0 + $0x1b8] sm:$0xff]
  %v71 = vld [vmem:[%s0 + $0x1c0] sm:$0xff]
  %v72 = vld [vmem:[%s0 + $0x1c8] sm:$0xff]
  %v73 = vld [vmem:[%s0 + $0x1d0] sm:$0xff]
  %v74 = vld [vmem:[%s0 + $0x1d8] sm:$0xff]
  %v75 = vld [vmem:[%s0 + $0x1e0] sm:$0xff]
  %v76 = vld [vmem:[%s0 + $0x1e8] sm:$0xff]
  %v77 = vld [vmem:[%s0 + $0x1f0] sm:$0xff]
  %v78 = vld [vmem:[%s0 + $0x1f8] sm:$0xff]
  %v79 = vpack.c.bf16 %v16, %v15
  %v80 = vpack.c.bf16 %v18, %v17
  %v81 = vpack.c.bf16 %v20, %v19
  %v82 = vpack.c.bf16 %v22, %v21
  %v83 = vpack.c.bf16 %v24, %v23
  %v84 = vpack.c.bf16 %v26, %v25
  %v85 = vpack.c.bf16 %v28, %v27
  %v86 = vpack.c.bf16 %v30, %v29
  %v87 = vpack.c.bf16 %v32, %v31
  %v88 = vpack.c.bf16 %v34, %v33
  %v89 = vpack.c.bf16 %v36, %v35
  %v90 = vpack.c.bf16 %v38, %v37
  %v91 = vpack.c.bf16 %v40, %v39
  %v92 = vpack.c.bf16 %v42, %v41
  %v93 = vpack.c.bf16 %v44, %v43
  %v94 = vpack.c.bf16 %v46, %v45
  %v95 = vpack.c.bf16 %v48, %v47
  %v96 = vpack.c.bf16 %v50, %v49
  %v97 = vpack.c.bf16 %v52, %v51
  %v98 = vpack.c.bf16 %v54, %v53
  %v99 = vpack.c.bf16 %v56, %v55
  %v100 = vpack.c.bf16 %v58, %v57
  %v101 = vpack.c.bf16 %v60, %v59
  %v102 = vpack.c.bf16 %v62, %v61
  %v103 = vpack.c.bf16 %v64, %v63
  %v104 = vpack.c.bf16 %v66, %v65
  %v105 = vpack.c.bf16 %v68, %v67
  %v106 = vpack.c.bf16 %v70, %v69
  %v107 = vpack.c.bf16 %v72, %v71
  %v108 = vpack.c.bf16 %v74, %v73
  %v109 = vpack.c.bf16 %v76, %v75
  %v110 = vpack.c.bf16 %v78, %v77
  %v111 = vld [vmem:[%s1] sm:$0xf]
  %v112 = vld [vmem:[%s1 + $0x4] sm:$0xf]
  %v113 = vld [vmem:[%s1 + $0x8] sm:$0xf]
  %v114 = vld [vmem:[%s1 + $0xc] sm:$0xf]
  %v115 = vld [vmem:[%s2] sm:$0x1]
  %v117 = vlaneseq
  %v118 = vshrl.u32 %v117, 7
  %v119 = vsub.s32 0, %v118
  %v120 = vrot.slane %v115, %v119
  %v126 = vunpack.c.l.b16 %v111
  %v127 = vunpack.c.l.b16 %v112
  %v128 = vunpack.c.l.b16 %v113
  %v129 = vunpack.c.l.b16 %v114
  %v130 = vpack.c.b16 %v127, %v126
  %v131 = vpack.c.b16 %v129, %v128
  %vm134 = vcmask 261120
  %v136 = vsel %vm134, %v79, 0
  %v139 = vsel %vm134, %v80, 0
  %v142 = vsel %vm134, %v81, 0
  %v145 = vsel %vm134, %v82, 0
  %v148 = vsel %vm134, %v83, 0
  %v151 = vsel %vm134, %v84, 0
  %v154 = vsel %vm134, %v85, 0
  %v157 = vsel %vm134, %v86, 0
  %v160 = vsel %vm134, %v87, 0
  %v163 = vsel %vm134, %v88, 0
  %v166 = vsel %vm134, %v89, 0
  %v169 = vsel %vm134, %v90, 0
  %v172 = vsel %vm134, %v91, 0
  %v175 = vsel %vm134, %v92, 0
  %v178 = vsel %vm134, %v93, 0
  %v181 = vsel %vm134, %v94, 0
  %v184 = vsel %vm134, %v95, 0
  %v187 = vsel %vm134, %v96, 0
  %v190 = vsel %vm134, %v97, 0
  %v193 = vsel %vm134, %v98, 0
  %v196 = vsel %vm134, %v99, 0
  %v199 = vsel %vm134, %v100, 0
  %v202 = vsel %vm134, %v101, 0
  %v205 = vsel %vm134, %v102, 0
  %v208 = vsel %vm134, %v103, 0
  %v211 = vsel %vm134, %v104, 0
  %v214 = vsel %vm134, %v105, 0
  %v217 = vsel %vm134, %v106, 0
  %v220 = vsel %vm134, %v107, 0
  %v223 = vsel %vm134, %v108, 0
  %v226 = vsel %vm134, %v109, 0
  %v229 = vsel %vm134, %v110, 0
  %231 = vmatprep.subr.bf16.mxu0 0
  %232 = vmatpush1.bf16.msra.mxu0 %v130
  %233 = vmatprep.subr.bf16.mxu0 0
  %234 = vmatpush1.bf16.msra.mxu0 %v131
  %235 = vmatprep.subr.bf16.mxu0 0
  %236 = vmatpush1.bf16.msra.mxu0 0
  %237 = vmatprep.subr.bf16.mxu0 0
  %238 = vmatpush1.bf16.msra.mxu0 0
  %239 = vmatprep.subr.bf16.mxu0 0
  %240 = vmatpush1.bf16.msra.mxu0 0
  %241 = vmatprep.subr.bf16.mxu0 0
  %242 = vmatpush1.bf16.msra.mxu0 0
  %243 = vmatprep.subr.bf16.mxu0 0
  %244 = vmatpush1.bf16.msra.mxu0 0
  %245 = vmatprep.subr.bf16.mxu0 0
  %246 = vmatpush1.bf16.msra.mxu0 0
  %247 = vmatprep.subr.bf16.mxu0 0
  %248 = vmatpush1.bf16.msra.mxu0 0
  %249 = vmatprep.subr.bf16.mxu0 0
  %250 = vmatpush1.bf16.msra.mxu0 0
  %251 = vmatprep.subr.bf16.mxu0 0
  %252 = vmatpush1.bf16.msra.mxu0 0
  %253 = vmatprep.subr.bf16.mxu0 0
  %254 = vmatpush1.bf16.msra.mxu0 0
  %255 = vmatprep.subr.bf16.mxu0 0
  %256 = vmatpush1.bf16.msra.mxu0 0
  %257 = vmatprep.subr.bf16.mxu0 0
  %258 = vmatpush1.bf16.msra.mxu0 0
  %259 = vmatprep.subr.bf16.mxu0 0
  %260 = vmatpush1.bf16.msra.mxu0 0
  %261 = vmatprep.subr.bf16.mxu0 0
  %262 = vmatpush1.bf16.msra.mxu0 0
  %263 = vmatprep.mubr.bf16.mxu0 0
  %264 = vmatmul.mubr.bf16.gmra.mrb[0].mxu0 %v136
  %v265 = vpop.f32.mrb[0].mxu0
  %v266 = vadd.f32 %v120, %v265
  %v267 = vpop.f32.mrb[0].mxu0
  %v268 = vpop.f32.mrb[0].mxu0
  %v269 = vadd.f32 %v120, %v268
  %v270 = vpop.f32.mrb[0].mxu0
  %271 = vmatprep.mubr.bf16.mxu0 0
  %272 = vmatmul.mubr.bf16.gmra.mrb[0].mxu0 %v139
  %v273 = vpop.f32.mrb[0].mxu0
  %v274 = vadd.f32 %v120, %v273
  %v275 = vpop.f32.mrb[0].mxu0
  %v276 = vpop.f32.mrb[0].mxu0
  %v277 = vadd.f32 %v120, %v276
  %v278 = vpop.f32.mrb[0].mxu0
  %279 = vmatprep.mubr.bf16.mxu0 0
  %280 = vmatmul.mubr.bf16.gmra.mrb[0].mxu0 %v142
  %v281 = vpop.f32.mrb[0].mxu0
  %v282 = vadd.f32 %v120, %v281
  %v283 = vpop.f32.mrb[0].mxu0
  %v284 = vpop.f32.mrb[0].mxu0
  %v285 = vadd.f32 %v120, %v284
  %v286 = vpop.f32.mrb[0].mxu0
  %287 = vmatprep.mubr.bf16.mxu0 0
  %288 = vmatmul.mubr.bf16.gmra.mrb[0].mxu0 %v145
  %v289 = vpop.f32.mrb[0].mxu0
  %v290 = vadd.f32 %v120, %v289
  %v291 = vpop.f32.mrb[0].mxu0
  %v292 = vpop.f32.mrb[0].mxu0
  %v293 = vadd.f32 %v120, %v292
  %v294 = vpop.f32.mrb[0].mxu0
  %295 = vmatprep.mubr.bf16.mxu0 0
  %296 = vmatmul.mubr.bf16.gmra.mrb[0].mxu0 %v148
  %v297 = vpop.f32.mrb[0].mxu0
  %v298 = vadd.f32 %v120, %v297
  %v299 = vpop.f32.mrb[0].mxu0
  %v300 = vpop.f32.mrb[0].mxu0
  %v301 = vadd.f32 %v120, %v300
  %v302 = vpop.f32.mrb[0].mxu0
  %303 = vmatprep.mubr.bf16.mxu0 0
  %304 = vmatmul.mubr.bf16.gmra.mrb[0].mxu0 %v151
  %v305 = vpop.f32.mrb[0].mxu0
  %v306 = vadd.f32 %v120, %v305
  %v307 = vpop.f32.mrb[0].mxu0
  %v308 = vpop.f32.mrb[0].mxu0
  %v309 = vadd.f32 %v120, %v308
  %v310 = vpop.f32.mrb[0].mxu0
  %311 = vmatprep.mubr.bf16.mxu0 0
  %312 = vmatmul.mubr.bf16.gmra.mrb[0].mxu0 %v154
  %v313 = vpop.f32.mrb[0].mxu0
  %v314 = vadd.f32 %v120, %v313
  %v315 = vpop.f32.mrb[0].mxu0
  %v316 = vpop.f32.mrb[0].mxu0
  %v317 = vadd.f32 %v120, %v316
  %v318 = vpop.f32.mrb[0].mxu0
  %319 = vmatprep.mubr.bf16.mxu0 0
  %320 = vmatmul.mubr.bf16.gmra.mrb[0].mxu0 %v157
  %v321 = vpop.f32.mrb[0].mxu0
  %v322 = vadd.f32 %v120, %v321
  %v323 = vpop.f32.mrb[0].mxu0
  %v324 = vpop.f32.mrb[0].mxu0
  %v325 = vadd.f32 %v120, %v324
  %v326 = vpop.f32.mrb[0].mxu0
  %327 = vmatprep.mubr.bf16.mxu0 0
  %328 = vmatmul.mubr.bf16.gmra.mrb[0].mxu0 %v160
  %v329 = vpop.f32.mrb[0].mxu0
  %v330 = vadd.f32 %v120, %v329
  %v331 = vpop.f32.mrb[0].mxu0
  %v332 = vpop.f32.mrb[0].mxu0
  %v333 = vadd.f32 %v120, %v332
  %v334 = vpop.f32.mrb[0].mxu0
  %335 = vmatprep.mubr.bf16.mxu0 0
  %336 = vmatmul.mubr.bf16.gmra.mrb[0].mxu0 %v163
  %v337 = vpop.f32.mrb[0].mxu0
  %v338 = vadd.f32 %v120, %v337
  %v339 = vpop.f32.mrb[0].mxu0
  %v340 = vpop.f32.mrb[0].mxu0
  %v341 = vadd.f32 %v120, %v340
  %v342 = vpop.f32.mrb[0].mxu0
  %343 = vmatprep.mubr.bf16.mxu0 0
  %344 = vmatmul.mubr.bf16.gmra.mrb[0].mxu0 %v166
  %v345 = vpop.f32.mrb[0].mxu0
  %v346 = vadd.f32 %v120, %v345
  %v347 = vpop.f32.mrb[0].mxu0
  %v348 = vpop.f32.mrb[0].mxu0
  %v349 = vadd.f32 %v120, %v348
  %v350 = vpop.f32.mrb[0].mxu0
  %351 = vmatprep.mubr.bf16.mxu0 0
  %352 = vmatmul.mubr.bf16.gmra.mrb[0].mxu0 %v169
  %v353 = vpop.f32.mrb[0].mxu0
  %v354 = vadd.f32 %v120, %v353
  %v355 = vpop.f32.mrb[0].mxu0
  %v356 = vpop.f32.mrb[0].mxu0
  %v357 = vadd.f32 %v120, %v356
  %v358 = vpop.f32.mrb[0].mxu0
  %359 = vmatprep.mubr.bf16.mxu0 0
  %360 = vmatmul.mubr.bf16.gmra.mrb[0].mxu0 %v172
  %v361 = vpop.f32.mrb[0].mxu0
  %v362 = vadd.f32 %v120, %v361
  %v363 = vpop.f32.mrb[0].mxu0
  %v364 = vpop.f32.mrb[0].mxu0
  %v365 = vadd.f32 %v120, %v364
  %v366 = vpop.f32.mrb[0].mxu0
  %367 = vmatprep.mubr.bf16.mxu0 0
  %368 = vmatmul.mubr.bf16.gmra.mrb[0].mxu0 %v175
  %v369 = vpop.f32.mrb[0].mxu0
  %v370 = vadd.f32 %v120, %v369
  %v371 = vpop.f32.mrb[0].mxu0
  %v372 = vpop.f32.mrb[0].mxu0
  %v373 = vadd.f32 %v120, %v372
  %v374 = vpop.f32.mrb[0].mxu0
  %375 = vmatprep.mubr.bf16.mxu0 0
  %376 = vmatmul.mubr.bf16.gmra.mrb[0].mxu0 %v178
  %v377 = vpop.f32.mrb[0].mxu0
  %v378 = vadd.f32 %v120, %v377
  %v379 = vpop.f32.mrb[0].mxu0
  %v380 = vpop.f32.mrb[0].mxu0
  %v381 = vadd.f32 %v120, %v380
  %v382 = vpop.f32.mrb[0].mxu0
  %383 = vmatprep.mubr.bf16.mxu0 0
  %384 = vmatmul.mubr.bf16.gmra.mrb[0].mxu0 %v181
  %v385 = vpop.f32.mrb[0].mxu0
  %v386 = vadd.f32 %v120, %v385
  %v387 = vpop.f32.mrb[0].mxu0
  %v388 = vpop.f32.mrb[0].mxu0
  %v389 = vadd.f32 %v120, %v388
  %v390 = vpop.f32.mrb[0].mxu0
  %391 = vmatprep.mubr.bf16.mxu0 0
  %392 = vmatmul.mubr.bf16.gmra.mrb[0].mxu0 %v184
  %v393 = vpop.f32.mrb[0].mxu0
  %v394 = vadd.f32 %v120, %v393
  %v395 = vpop.f32.mrb[0].mxu0
  %v396 = vpop.f32.mrb[0].mxu0
  %v397 = vadd.f32 %v120, %v396
  %v398 = vpop.f32.mrb[0].mxu0
  %399 = vmatprep.mubr.bf16.mxu0 0
  %400 = vmatmul.mubr.bf16.gmra.mrb[0].mxu0 %v187
  %v401 = vpop.f32.mrb[0].mxu0
  %v402 = vadd.f32 %v120, %v401
  %v403 = vpop.f32.mrb[0].mxu0
  %v404 = vpop.f32.mrb[0].mxu0
  %v405 = vadd.f32 %v120, %v404
  %v406 = vpop.f32.mrb[0].mxu0
  %407 = vmatprep.mubr.bf16.mxu0 0
  %408 = vmatmul.mubr.bf16.gmra.mrb[0].mxu0 %v190
  %v409 = vpop.f32.mrb[0].mxu0
  %v410 = vadd.f32 %v120, %v409
  %v411 = vpop.f32.mrb[0].mxu0
  %v412 = vpop.f32.mrb[0].mxu0
  %v413 = vadd.f32 %v120, %v412
  %v414 = vpop.f32.mrb[0].mxu0
  %415 = vmatprep.mubr.bf16.mxu0 0
  %416 = vmatmul.mubr.bf16.gmra.mrb[0].mxu0 %v193
  %v417 = vpop.f32.mrb[0].mxu0
  %v418 = vadd.f32 %v120, %v417
  %v419 = vpop.f32.mrb[0].mxu0
  %v420 = vpop.f32.mrb[0].mxu0
  %v421 = vadd.f32 %v120, %v420
  %v422 = vpop.f32.mrb[0].mxu0
  %423 = vmatprep.mubr.bf16.mxu0 0
  %424 = vmatmul.mubr.bf16.gmra.mrb[0].mxu0 %v196
  %v425 = vpop.f32.mrb[0].mxu0
  %v426 = vadd.f32 %v120, %v425
  %v427 = vpop.f32.mrb[0].mxu0
  %v428 = vpop.f32.mrb[0].mxu0
  %v429 = vadd.f32 %v120, %v428
  %v430 = vpop.f32.mrb[0].mxu0
  %431 = vmatprep.mubr.bf16.mxu0 0
  %432 = vmatmul.mubr.bf16.gmra.mrb[0].mxu0 %v199
  %v433 = vpop.f32.mrb[0].mxu0
  %v434 = vadd.f32 %v120, %v433
  %v435 = vpop.f32.mrb[0].mxu0
  %v436 = vpop.f32.mrb[0].mxu0
  %v437 = vadd.f32 %v120, %v436
  %v438 = vpop.f32.mrb[0].mxu0
  %439 = vmatprep.mubr.bf16.mxu0 0
  %440 = vmatmul.mubr.bf16.gmra.mrb[0].mxu0 %v202
  %v441 = vpop.f32.mrb[0].mxu0
  %v442 = vadd.f32 %v120, %v441
  %v443 = vpop.f32.mrb[0].mxu0
  %v444 = vpop.f32.mrb[0].mxu0
  %v445 = vadd.f32 %v120, %v444
  %v446 = vpop.f32.mrb[0].mxu0
  %447 = vmatprep.mubr.bf16.mxu0 0
  %448 = vmatmul.mubr.bf16.gmra.mrb[0].mxu0 %v205
  %v449 = vpop.f32.mrb[0].mxu0
  %v450 = vadd.f32 %v120, %v449
  %v451 = vpop.f32.mrb[0].mxu0
  %v452 = vpop.f32.mrb[0].mxu0
  %v453 = vadd.f32 %v120, %v452
  %v454 = vpop.f32.mrb[0].mxu0
  %455 = vmatprep.mubr.bf16.mxu0 0
  %456 = vmatmul.mubr.bf16.gmra.mrb[0].mxu0 %v208
  %v457 = vpop.f32.mrb[0].mxu0
  %v458 = vadd.f32 %v120, %v457
  %v459 = vpop.f32.mrb[0].mxu0
  %v460 = vpop.f32.mrb[0].mxu0
  %v461 = vadd.f32 %v120, %v460
  %v462 = vpop.f32.mrb[0].mxu0
  %463 = vmatprep.mubr.bf16.mxu0 0
  %464 = vmatmul.mubr.bf16.gmra.mrb[0].mxu0 %v211
  %v465 = vpop.f32.mrb[0].mxu0
  %v466 = vadd.f32 %v120, %v465
  %v467 = vpop.f32.mrb[0].mxu0
  %v468 = vpop.f32.mrb[0].mxu0
  %v469 = vadd.f32 %v120, %v468
  %v470 = vpop.f32.mrb[0].mxu0
  %471 = vmatprep.mubr.bf16.mxu0 0
  %472 = vmatmul.mubr.bf16.gmra.mrb[0].mxu0 %v214
  %v473 = vpop.f32.mrb[0].mxu0
  %v474 = vadd.f32 %v120, %v473
  %v475 = vpop.f32.mrb[0].mxu0
  %v476 = vpop.f32.mrb[0].mxu0
  %v477 = vadd.f32 %v120, %v476
  %v478 = vpop.f32.mrb[0].mxu0
  %479 = vmatprep.mubr.bf16.mxu0 0
  %480 = vmatmul.mubr.bf16.gmra.mrb[0].mxu0 %v217
  %v481 = vpop.f32.mrb[0].mxu0
  %v482 = vadd.f32 %v120, %v481
  %v483 = vpop.f32.mrb[0].mxu0
  %v484 = vpop.f32.mrb[0].mxu0
  %v485 = vadd.f32 %v120, %v484
  %v486 = vpop.f32.mrb[0].mxu0
  %487 = vmatprep.mubr.bf16.mxu0 0
  %488 = vmatmul.mubr.bf16.gmra.mrb[0].mxu0 %v220
  %v489 = vpop.f32.mrb[0].mxu0
  %v490 = vadd.f32 %v120, %v489
  %v491 = vpop.f32.mrb[0].mxu0
  %v492 = vpop.f32.mrb[0].mxu0
  %v493 = vadd.f32 %v120, %v492
  %v494 = vpop.f32.mrb[0].mxu0
  %495 = vmatprep.mubr.bf16.mxu0 0
  %496 = vmatmul.mubr.bf16.gmra.mrb[0].mxu0 %v223
  %v497 = vpop.f32.mrb[0].mxu0
  %v498 = vadd.f32 %v120, %v497
  %v499 = vpop.f32.mrb[0].mxu0
  %v500 = vpop.f32.mrb[0].mxu0
  %v501 = vadd.f32 %v120, %v500
  %v502 = vpop.f32.mrb[0].mxu0
  %503 = vmatprep.mubr.bf16.mxu0 0
  %504 = vmatmul.mubr.bf16.gmra.mrb[0].mxu0 %v226
  %v505 = vpop.f32.mrb[0].mxu0
  %v506 = vadd.f32 %v120, %v505
  %v507 = vpop.f32.mrb[0].mxu0
  %v508 = vpop.f32.mrb[0].mxu0
  %v509 = vadd.f32 %v120, %v508
  %v510 = vpop.f32.mrb[0].mxu0
  %511 = vmatprep.mubr.bf16.mxu0 0
  %512 = vmatmul.mubr.bf16.gmra.mrb[0].mxu0 %v229
  %v513 = vpop.f32.mrb[0].mxu0
  %v514 = vadd.f32 %v120, %v513
  %v515 = vpop.f32.mrb[0].mxu0
  %v516 = vpop.f32.mrb[0].mxu0
  %v517 = vadd.f32 %v120, %v516
  %v518 = vpop.f32.mrb[0].mxu0
  %519 = vdwg.mxu0
  %v520 = vpack.c.bf16 %v269, %v266
  %v521 = vpack.c.bf16 %v277, %v274
  %v522 = vpack.c.bf16 %v285, %v282
  %v523 = vpack.c.bf16 %v293, %v290
  %v524 = vpack.c.bf16 %v301, %v298
  %v525 = vpack.c.bf16 %v309, %v306
  %v526 = vpack.c.bf16 %v317, %v314
  %v527 = vpack.c.bf16 %v325, %v322
  %v528 = vpack.c.bf16 %v333, %v330
  %v529 = vpack.c.bf16 %v341, %v338
  %v530 = vpack.c.bf16 %v349, %v346
  %v531 = vpack.c.bf16 %v357, %v354
  %v532 = vpack.c.bf16 %v365, %v362
  %v533 = vpack.c.bf16 %v373, %v370
  %v534 = vpack.c.bf16 %v381, %v378
  %v535 = vpack.c.bf16 %v389, %v386
  %v536 = vpack.c.bf16 %v397, %v394
  %v537 = vpack.c.bf16 %v405, %v402
  %v538 = vpack.c.bf16 %v413, %v410
  %v539 = vpack.c.bf16 %v421, %v418
  %v540 = vpack.c.bf16 %v429, %v426
  %v541 = vpack.c.bf16 %v437, %v434
  %v542 = vpack.c.bf16 %v445, %v442
  %v543 = vpack.c.bf16 %v453, %v450
  %v544 = vpack.c.bf16 %v461, %v458
  %v545 = vpack.c.bf16 %v469, %v466
  %v546 = vpack.c.bf16 %v477, %v474
  %v547 = vpack.c.bf16 %v485, %v482
  %v548 = vpack.c.bf16 %v493, %v490
  %v549 = vpack.c.bf16 %v501, %v498
  %v550 = vpack.c.bf16 %v509, %v506
  %v551 = vpack.c.bf16 %v517, %v514
  %v584 = vunpack.c.l.b16 %v520
  %v585 = vunpack.c.h.b16 %v520
  %v586 = vunpack.c.l.b16 %v521
  %v587 = vunpack.c.h.b16 %v521
  %v588 = vunpack.c.l.b16 %v522
  %v589 = vunpack.c.h.b16 %v522
  %v590 = vunpack.c.l.b16 %v523
  %v591 = vunpack.c.h.b16 %v523
  %v592 = vunpack.c.l.b16 %v524
  %v593 = vunpack.c.h.b16 %v524
  %v594 = vunpack.c.l.b16 %v525
  %v595 = vunpack.c.h.b16 %v525
  %v596 = vunpack.c.l.b16 %v526
  %v597 = vunpack.c.h.b16 %v526
  %v598 = vunpack.c.l.b16 %v527
  %v599 = vunpack.c.h.b16 %v527
  %v600 = vunpack.c.l.b16 %v528
  %v601 = vunpack.c.h.b16 %v528
  %v602 = vunpack.c.l.b16 %v529
  %v603 = vunpack.c.h.b16 %v529
  %v604 = vunpack.c.l.b16 %v530
  %v605 = vunpack.c.h.b16 %v530
  %v606 = vunpack.c.l.b16 %v531
  %v607 = vunpack.c.h.b16 %v531
  %v608 = vunpack.c.l.b16 %v532
  %v609 = vunpack.c.h.b16 %v532
  %v610 = vunpack.c.l.b16 %v533
  %v611 = vunpack.c.h.b16 %v533
  %v612 = vunpack.c.l.b16 %v534
  %v613 = vunpack.c.h.b16 %v534
  %v614 = vunpack.c.l.b16 %v535
  %v615 = vunpack.c.h.b16 %v535
  %v616 = vunpack.c.l.b16 %v536
  %v617 = vunpack.c.h.b16 %v536
  %v618 = vunpack.c.l.b16 %v537
  %v619 = vunpack.c.h.b16 %v537
  %v620 = vunpack.c.l.b16 %v538
  %v621 = vunpack.c.h.b16 %v538
  %v622 = vunpack.c.l.b16 %v539
  %v623 = vunpack.c.h.b16 %v539
  %v624 = vunpack.c.l.b16 %v540
  %v625 = vunpack.c.h.b16 %v540
  %v626 = vunpack.c.l.b16 %v541
  %v627 = vunpack.c.h.b16 %v541
  %v628 = vunpack.c.l.b16 %v542
  %v629 = vunpack.c.h.b16 %v542
  %v630 = vunpack.c.l.b16 %v543
  %v631 = vunpack.c.h.b16 %v543
  %v632 = vunpack.c.l.b16 %v544
  %v633 = vunpack.c.h.b16 %v544
  %v634 = vunpack.c.l.b16 %v545
  %v635 = vunpack.c.h.b16 %v545
  %v636 = vunpack.c.l.b16 %v546
  %v637 = vunpack.c.h.b16 %v546
  %v638 = vunpack.c.l.b16 %v547
  %v639 = vunpack.c.h.b16 %v547
  %v640 = vunpack.c.l.b16 %v548
  %v641 = vunpack.c.h.b16 %v548
  %v642 = vunpack.c.l.b16 %v549
  %v643 = vunpack.c.h.b16 %v549
  %v644 = vunpack.c.l.b16 %v550
  %v645 = vunpack.c.h.b16 %v550
  %v646 = vunpack.c.l.b16 %v551
  %v647 = vunpack.c.h.b16 %v551
  %v648 = vpack.c.b16 %v584, %v584
  %v649 = vpack.c.b16 %v585, %v585
  %v650 = vpack.c.b16 %v586, %v586
  %v651 = vpack.c.b16 %v587, %v587
  %v652 = vpack.c.b16 %v588, %v588
  %v653 = vpack.c.b16 %v589, %v589
  %v654 = vpack.c.b16 %v590, %v590
  %v655 = vpack.c.b16 %v591, %v591
  %v656 = vpack.c.b16 %v592, %v592
  %v657 = vpack.c.b16 %v593, %v593
  %v658 = vpack.c.b16 %v594, %v594
  %v659 = vpack.c.b16 %v595, %v595
  %v660 = vpack.c.b16 %v596, %v596
  %v661 = vpack.c.b16 %v597, %v597
  %v662 = vpack.c.b16 %v598, %v598
  %v663 = vpack.c.b16 %v599, %v599
  %v664 = vpack.c.b16 %v600, %v600
  %v665 = vpack.c.b16 %v601, %v601
  %v666 = vpack.c.b16 %v602, %v602
  %v667 = vpack.c.b16 %v603, %v603
  %v668 = vpack.c.b16 %v604, %v604
  %v669 = vpack.c.b16 %v605, %v605
  %v670 = vpack.c.b16 %v606, %v606
  %v671 = vpack.c.b16 %v607, %v607
  %v672 = vpack.c.b16 %v608, %v608
  %v673 = vpack.c.b16 %v609, %v609
  %v674 = vpack.c.b16 %v610, %v610
  %v675 = vpack.c.b16 %v611, %v611
  %v676 = vpack.c.b16 %v612, %v612
  %v677 = vpack.c.b16 %v613, %v613
  %v678 = vpack.c.b16 %v614, %v614
  %v679 = vpack.c.b16 %v615, %v615
  %v680 = vpack.c.b16 %v616, %v616
  %v681 = vpack.c.b16 %v617, %v617
  %v682 = vpack.c.b16 %v618, %v618
  %v683 = vpack.c.b16 %v619, %v619
  %v684 = vpack.c.b16 %v620, %v620
  %v685 = vpack.c.b16 %v621, %v621
  %v686 = vpack.c.b16 %v622, %v622
  %v687 = vpack.c.b16 %v623, %v623
  %v688 = vpack.c.b16 %v624, %v624
  %v689 = vpack.c.b16 %v625, %v625
  %v690 = vpack.c.b16 %v626, %v626
  %v691 = vpack.c.b16 %v627, %v627
  %v692 = vpack.c.b16 %v628, %v628
  %v693 = vpack.c.b16 %v629, %v629
  %v694 = vpack.c.b16 %v630, %v630
  %v695 = vpack.c.b16 %v631, %v631
  %v696 = vpack.c.b16 %v632, %v632
  %v697 = vpack.c.b16 %v633, %v633
  %v698 = vpack.c.b16 %v634, %v634
  %v699 = vpack.c.b16 %v635, %v635
  %v700 = vpack.c.b16 %v636, %v636
  %v701 = vpack.c.b16 %v637, %v637
  %v702 = vpack.c.b16 %v638, %v638
  %v703 = vpack.c.b16 %v639, %v639
  %v704 = vpack.c.b16 %v640, %v640
  %v705 = vpack.c.b16 %v641, %v641
  %v706 = vpack.c.b16 %v642, %v642
  %v707 = vpack.c.b16 %v643, %v643
  %v708 = vpack.c.b16 %v644, %v644
  %v709 = vpack.c.b16 %v645, %v645
  %v710 = vpack.c.b16 %v646, %v646
  %v711 = vpack.c.b16 %v647, %v647
  %vm776 = vcmask 257024
  %777 = vst.msk [vmem:[%s3] sm:$0xf] %vm776, %v648
  %778 = vst.msk [vmem:[%s3 + $0x4] sm:$0xf] %vm776, %v649
  %779 = vst.msk [vmem:[%s3 + $0x8] sm:$0xf] %vm776, %v650
  %780 = vst.msk [vmem:[%s3 + $0xc] sm:$0xf] %vm776, %v651
  %781 = vst.msk [vmem:[%s3 + $0x10] sm:$0xf] %vm776, %v652
  %782 = vst.msk [vmem:[%s3 + $0x14] sm:$0xf] %vm776, %v653
  %783 = vst.msk [vmem:[%s3 + $0x18] sm:$0xf] %vm776, %v654
  %784 = vst.msk [vmem:[%s3 + $0x1c] sm:$0xf] %vm776, %v655
  %785 = vst.msk [vmem:[%s3 + $0x20] sm:$0xf] %vm776, %v656
  %786 = vst.msk [vmem:[%s3 + $0x24] sm:$0xf] %vm776, %v657
  %787 = vst.msk [vmem:[%s3 + $0x28] sm:$0xf] %vm776, %v658
  %788 = vst.msk [vmem:[%s3 + $0x2c] sm:$0xf] %vm776, %v659
  %789 = vst.msk [vmem:[%s3 + $0x30] sm:$0xf] %vm776, %v660
  %790 = vst.msk [vmem:[%s3 + $0x34] sm:$0xf] %vm776, %v661
  %791 = vst.msk [vmem:[%s3 + $0x38] sm:$0xf] %vm776, %v662
  %792 = vst.msk [vmem:[%s3 + $0x3c] sm:$0xf] %vm776, %v663
  %793 = vst.msk [vmem:[%s3 + $0x40] sm:$0xf] %vm776, %v664
  %794 = vst.msk [vmem:[%s3 + $0x44] sm:$0xf] %vm776, %v665
  %795 = vst.msk [vmem:[%s3 + $0x48] sm:$0xf] %vm776, %v666
  %796 = vst.msk [vmem:[%s3 + $0x4c] sm:$0xf] %vm776, %v667
  %797 = vst.msk [vmem:[%s3 + $0x50] sm:$0xf] %vm776, %v668
  %798 = vst.msk [vmem:[%s3 + $0x54] sm:$0xf] %vm776, %v669
  %799 = vst.msk [vmem:[%s3 + $0x58] sm:$0xf] %vm776, %v670
  %800 = vst.msk [vmem:[%s3 + $0x5c] sm:$0xf] %vm776, %v671
  %801 = vst.msk [vmem:[%s3 + $0x60] sm:$0xf] %vm776, %v672
  %802 = vst.msk [vmem:[%s3 + $0x64] sm:$0xf] %vm776, %v673
  %803 = vst.msk [vmem:[%s3 + $0x68] sm:$0xf] %vm776, %v674
  %804 = vst.msk [vmem:[%s3 + $0x6c] sm:$0xf] %vm776, %v675
  %805 = vst.msk [vmem:[%s3 + $0x70] sm:$0xf] %vm776, %v676
  %806 = vst.msk [vmem:[%s3 + $0x74] sm:$0xf] %vm776, %v677
  %807 = vst.msk [vmem:[%s3 + $0x78] sm:$0xf] %vm776, %v678
  %808 = vst.msk [vmem:[%s3 + $0x7c] sm:$0xf] %vm776, %v679
  %809 = vst.msk [vmem:[%s3 + $0x80] sm:$0xf] %vm776, %v680
  %810 = vst.msk [vmem:[%s3 + $0x84] sm:$0xf] %vm776, %v681
  %811 = vst.msk [vmem:[%s3 + $0x88] sm:$0xf] %vm776, %v682
  %812 = vst.msk [vmem:[%s3 + $0x8c] sm:$0xf] %vm776, %v683
  %813 = vst.msk [vmem:[%s3 + $0x90] sm:$0xf] %vm776, %v684
  %814 = vst.msk [vmem:[%s3 + $0x94] sm:$0xf] %vm776, %v685
  %815 = vst.msk [vmem:[%s3 + $0x98] sm:$0xf] %vm776, %v686
  %816 = vst.msk [vmem:[%s3 + $0x9c] sm:$0xf] %vm776, %v687
  %817 = vst.msk [vmem:[%s3 + $0xa0] sm:$0xf] %vm776, %v688
  %818 = vst.msk [vmem:[%s3 + $0xa4] sm:$0xf] %vm776, %v689
  %819 = vst.msk [vmem:[%s3 + $0xa8] sm:$0xf] %vm776, %v690
  %820 = vst.msk [vmem:[%s3 + $0xac] sm:$0xf] %vm776, %v691
  %821 = vst.msk [vmem:[%s3 + $0xb0] sm:$0xf] %vm776, %v692
  %822 = vst.msk [vmem:[%s3 + $0xb4] sm:$0xf] %vm776, %v693
  %823 = vst.msk [vmem:[%s3 + $0xb8] sm:$0xf] %vm776, %v694
  %824 = vst.msk [vmem:[%s3 + $0xbc] sm:$0xf] %vm776, %v695
  %825 = vst.msk [vmem:[%s3 + $0xc0] sm:$0xf] %vm776, %v696
  %826 = vst.msk [vmem:[%s3 + $0xc4] sm:$0xf] %vm776, %v697
  %827 = vst.msk [vmem:[%s3 + $0xc8] sm:$0xf] %vm776, %v698
  %828 = vst.msk [vmem:[%s3 + $0xcc] sm:$0xf] %vm776, %v699
  %829 = vst.msk [vmem:[%s3 + $0xd0] sm:$0xf] %vm776, %v700
  %830 = vst.msk [vmem:[%s3 + $0xd4] sm:$0xf] %vm776, %v701
  %831 = vst.msk [vmem:[%s3 + $0xd8] sm:$0xf] %vm776, %v702
  %832 = vst.msk [vmem:[%s3 + $0xdc] sm:$0xf] %vm776, %v703
  %833 = vst.msk [vmem:[%s3 + $0xe0] sm:$0xf] %vm776, %v704
  %834 = vst.msk [vmem:[%s3 + $0xe4] sm:$0xf] %vm776, %v705
  %835 = vst.msk [vmem:[%s3 + $0xe8] sm:$0xf] %vm776, %v706
  %836 = vst.msk [vmem:[%s3 + $0xec] sm:$0xf] %vm776, %v707
  %837 = vst.msk [vmem:[%s3 + $0xf0] sm:$0xf] %vm776, %v708
  %838 = vst.msk [vmem:[%s3 + $0xf4] sm:$0xf] %vm776, %v709
  %839 = vst.msk [vmem:[%s3 + $0xf8] sm:$0xf] %vm776, %v710
  %840 = vst.msk [vmem:[%s3 + $0xfc] sm:$0xf] %vm776, %v711
  // Predicated region
  $region14: #{tpu_custom_call.1} parent=0 // pred_check
    _
  $region15: #{tpu_custom_call.1} parent=0 // pred_check_branch
    %842 = sbr.rel (0) target = $region17
  $region16: #{tpu_custom_call.1} parent=0 // pred_region
    _
  $region17: #{tpu_custom_call.1} parent=0 // pred_fallthru
    _
  // Predicated region
  $region18: #{tpu_custom_call.1} parent=0 // pred_check
    _
  $region19: #{tpu_custom_call.1} parent=0 // pred_check_branch
    %844 = sbr.rel (0) target = $region21
  $region20: #{tpu_custom_call.1} parent=0 // pred_region
    _
  $region21: #{tpu_custom_call.1} parent=0 // pred_fallthru
    _

</llo_original>
